<compile_context>
chip_gen: v7x
topology: tpu7x:2x2x1
jax: 0.10.0
libtpu: 0.0.40
codegen_flags: <defaults>
</compile_context>

<pallas_src>
import jax
import jax.numpy as jnp
from jax import lax
from jax.experimental import pallas as pl
from jax.experimental.pallas import tpu as pltpu


def _round_up(v, m):
    return ((v + m - 1) // m) * m


def ffnn_kernel(x_ref,
                w1_ref, b1_ref,
                w2_ref, b2_ref,
                w3_ref, b3_ref,
                w4_ref, b4_ref,
                w5_ref, b5_ref,
                out_ref):
    """One (tile_m, input_size) row-tile of the fused 5-layer MLP."""
    h = x_ref[...].astype(jnp.bfloat16)     # no-op when x is already bf16

    # entree + relu1
    h = jnp.dot(h, w1_ref[...], preferred_element_type=jnp.float32) + b1_ref[...]
    h = jnp.maximum(h, 0.0)
    # cachee1 + relu2
    h = jnp.dot(h.astype(jnp.bfloat16), w2_ref[...],
                preferred_element_type=jnp.float32) + b2_ref[...]
    h = jnp.maximum(h, 0.0)
    # cachee2 + relu3
    h = jnp.dot(h.astype(jnp.bfloat16), w3_ref[...],
                preferred_element_type=jnp.float32) + b3_ref[...]
    h = jnp.maximum(h, 0.0)
    # cachee3 + relu4
    h = jnp.dot(h.astype(jnp.bfloat16), w4_ref[...],
                preferred_element_type=jnp.float32) + b4_ref[...]
    h = jnp.maximum(h, 0.0)

    # sortie (out_features = 1), computed directly in the lane-dense
    # orientation: (1, h3) . (tile_m, h3)^T -> (1, tile_m)  (same q@k.T
    # contraction pattern as attention).  This keeps the sigmoid and the
    # output store full-lane instead of (tile_m, 1) at 1/128 lane occupancy.
    logits = lax.dot_general(
        w5_ref[...], h.astype(jnp.bfloat16),
        (((1,), (1,)), ((), ())),
        preferred_element_type=jnp.float32) + b5_ref[...]          # (1, tile_m)

    # sigmoid: exp and approximate reciprocal both land on the EUP slot.
    out_ref[...] = pl.reciprocal(1.0 + jnp.exp(-logits), approx=True)


def ffnn_forward(x, params, tile_m=2048):
    """Gridded pallas_call: batch tiled by tile_m, weights VMEM-resident."""
    (w1, b1), (w2, b2), (w3, b3), (w4, b4), (w5_row, b5) = params
    n, input_size = x.shape

    # ---- batch-tile selection --------------------------------------------
    # Big tiles amortize per-grid-step overhead; for large batches keep >= 2
    # tiles so v7x's two TensorCores both get work on the "parallel" axis.
    # No jnp.pad of x: the ragged last tile reads whatever lies past row n
    # (rows are independent) and those rows are sliced off at the end.
    n8 = _round_up(max(n, 1), 8)
    if n8 <= tile_m:
        tile_m = n8                                   # single tile
    else:
        tm = max(128, (tile_m // 128) * 128)          # lane-dense out stores
        half = _round_up((n8 + 1) // 2, 128)          # aim for >= 2 tiles
        tile_m = min(tm, half)
    n_tiles = pl.cdiv(n, tile_m)
    pad_n = n_tiles * tile_m

    flat_wb = [w1, b1, w2, b2, w3, b3, w4, b4, w5_row, b5]

    def resident(arr):
        # Full-array block + constant index_map -> fetched into VMEM once.
        return pl.BlockSpec(arr.shape, lambda i: (0, 0))

    in_specs = [pl.BlockSpec((tile_m, input_size), lambda i: (i, 0))]
    in_specs += [resident(a) for a in flat_wb]
    # Lane-dense output: (1, pad_n) array tiled as (1, tile_m) blocks.
    out_specs = pl.BlockSpec((1, tile_m), lambda i: (0, i))

    in_size, h1 = w1.shape[1], w2.shape[1]
    h2, h3 = w3.shape[1], w4.shape[1]
    widths = (input_size, in_size, h1, h2, h3)
    flops = 2 * pad_n * (input_size * in_size + in_size * h1 + h1 * h2
                         + h2 * h3 + h3)
    w_bytes = sum(int(a.size) * a.dtype.itemsize for a in flat_wb)
    bytes_accessed = n * input_size * x.dtype.itemsize + w_bytes + pad_n * 4

    # VMEM budget: double-buffered x/out tiles + weights + activation headroom
    # (matters on v5e whose scoped-VMEM default is only 16 MiB).
    need = (2 * tile_m * input_size * x.dtype.itemsize
            + 2 * tile_m * 4
            + 2 * w_bytes
            + 4 * tile_m * max(widths) * 4)
    vmem_limit = int(min(max(need, 32 * 1024 * 1024), 64 * 1024 * 1024))

    out = pl.pallas_call(
        ffnn_kernel,
        out_shape=jax.ShapeDtypeStruct((1, pad_n), jnp.float32),
        grid=(n_tiles,),
        in_specs=in_specs,
        out_specs=out_specs,
        compiler_params=pltpu.CompilerParams(
            dimension_semantics=("parallel",),
            vmem_limit_bytes=vmem_limit),
        cost_estimate=pl.CostEstimate(flops=flops,
                                      transcendentals=2 * pad_n,
                                      bytes_accessed=bytes_accessed),
    )(x, *flat_wb)

    return out[0, :n].reshape(n, 1)


def init_linear(key, fan_in, fan_out, w_dtype=jnp.bfloat16):
    """PyTorch-like uniform init; weight stored (in, out), bias (1, out) f32."""
    kw, kb = jax.random.split(key)
    bound = 1.0 / float(fan_in) ** 0.5
    w = jax.random.uniform(kw, (fan_in, fan_out), jnp.float32, -bound, bound)
    b = jax.random.uniform(kb, (1, fan_out), jnp.float32, -bound, bound)
    return w.astype(w_dtype), b


def reference_forward(x, params):
    """Plain-JAX reference following the same bf16-matmul / f32-accumulate path."""
    (w1, b1), (w2, b2), (w3, b3), (w4, b4), (w5_row, b5) = params
    h = x
    for w, b in ((w1, b1), (w2, b2), (w3, b3), (w4, b4)):
        h = jnp.dot(h.astype(jnp.bfloat16), w,
                    preferred_element_type=jnp.float32) + b
        h = jnp.maximum(h, 0.0)
    logits = jnp.dot(h.astype(jnp.bfloat16), jnp.transpose(w5_row),
                     preferred_element_type=jnp.float32) + b5
    return 1.0 / (1.0 + jnp.exp(-logits))


if __name__ == "__main__":
    # Small FFNN config (p_dropout = 0.0 -> no dropout in forward).
    input_size = 256
    in_size = 128
    hidden1 = 128
    hidden2 = 128
    hidden3 = 128
    batch = 8

    key = jax.random.PRNGKey(0)
    kx, k1, k2, k3, k4, k5, kx2 = jax.random.split(key, 7)

    # x produced in bf16 upstream of the kernel (halves the dominant DMA).
    x = jax.random.normal(kx, (batch, input_size), jnp.float32).astype(jnp.bfloat16)

    # Hidden layers: bf16 weights (MXU fast path). Final layer stored as a
    # bf16 (1, hidden3) row (lhs of the lane-dense dot); bias (1, 1) f32.
    w5_col, b5 = init_linear(k5, hidden3, 1)
    params = [
        init_linear(k1, input_size, in_size),
        init_linear(k2, in_size, hidden1),
        init_linear(k3, hidden1, hidden2),
        init_linear(k4, hidden2, hidden3),
        (jnp.transpose(w5_col), b5),
    ]

    # Test 1: tiny batch (single grid step, tile shrunk to 8 rows).
    out = jax.block_until_ready(ffnn_forward(x, params))
    ref = reference_forward(x, params)
    assert out.shape == (batch, 1)
    assert jnp.allclose(out, ref, atol=2e-3, rtol=2e-3), "mismatch vs reference"

    # Test 2: multi-tile grid with a ragged last tile (600 rows, 256-row tiles,
    # no wrapper-side padding copy of x).
    batch2 = 600
    x2 = jax.random.normal(kx2, (batch2, input_size), jnp.float32).astype(jnp.bfloat16)
    out2 = jax.block_until_ready(ffnn_forward(x2, params, tile_m=256))
    ref2 = reference_forward(x2, params)
    assert out2.shape == (batch2, 1)
    assert jnp.allclose(out2, ref2, atol=2e-3, rtol=2e-3), "mismatch (gridded)"

    # Test 3: default large-tile path (single 600-row tile).
    out3 = jax.block_until_ready(ffnn_forward(x2, params))
    assert jnp.allclose(out3, ref2, atol=2e-3, rtol=2e-3), "mismatch (large tile)"

    print("KERNEL_OK")
</pallas_src>

<mosaic_0001>
module attributes {stable_mosaic.version = 11 : i64} {
  func.func @ffnn_kernel(%arg0: i32, %arg1: memref<8x256xbf16, #tpu.memory_space<vmem>>, %arg2: memref<256x128xbf16, #tpu.memory_space<vmem>>, %arg3: memref<1x128xf32, #tpu.memory_space<vmem>>, %arg4: memref<128x128xbf16, #tpu.memory_space<vmem>>, %arg5: memref<1x128xf32, #tpu.memory_space<vmem>>, %arg6: memref<128x128xbf16, #tpu.memory_space<vmem>>, %arg7: memref<1x128xf32, #tpu.memory_space<vmem>>, %arg8: memref<128x128xbf16, #tpu.memory_space<vmem>>, %arg9: memref<1x128xf32, #tpu.memory_space<vmem>>, %arg10: memref<1x128xbf16, #tpu.memory_space<vmem>>, %arg11: memref<1x1xf32, #tpu.memory_space<vmem>>, %arg12: memref<1x8xf32, #tpu.memory_space<vmem>>) attributes {dimension_semantics = [#tpu.dimension_semantics<parallel>], iteration_bounds = array<i64: 1>, scalar_prefetch = 0 : i64, scratch_operands = 0 : i64, tpu.core_type = #tpu.core_type<tc>, window_params = [{transform_indices = @transform_0, window_bounds = array<i64: 8, 256>}, {pipeline_mode = #tpu.pipeline_mode<synchronous>, transform_indices = @transform_1, window_bounds = array<i64: 256, 128>}, {pipeline_mode = #tpu.pipeline_mode<synchronous>, transform_indices = @transform_2, window_bounds = array<i64: 1, 128>}, {pipeline_mode = #tpu.pipeline_mode<synchronous>, transform_indices = @transform_3, window_bounds = array<i64: 128, 128>}, {pipeline_mode = #tpu.pipeline_mode<synchronous>, transform_indices = @transform_4, window_bounds = array<i64: 1, 128>}, {pipeline_mode = #tpu.pipeline_mode<synchronous>, transform_indices = @transform_5, window_bounds = array<i64: 128, 128>}, {pipeline_mode = #tpu.pipeline_mode<synchronous>, transform_indices = @transform_6, window_bounds = array<i64: 1, 128>}, {pipeline_mode = #tpu.pipeline_mode<synchronous>, transform_indices = @transform_7, window_bounds = array<i64: 128, 128>}, {pipeline_mode = #tpu.pipeline_mode<synchronous>, transform_indices = @transform_8, window_bounds = array<i64: 1, 128>}, {pipeline_mode = #tpu.pipeline_mode<synchronous>, transform_indices = @transform_9, window_bounds = array<i64: 1, 128>}, {pipeline_mode = #tpu.pipeline_mode<synchronous>, transform_indices = @transform_10, window_bounds = array<i64: 1, 1>}, {transform_indices = @transform_11, window_bounds = array<i64: 1, 8>}]} {
    %c0 = arith.constant 0 : index
    %c0_0 = arith.constant 0 : index
    %0 = vector.load %arg1[%c0, %c0_0] : memref<8x256xbf16, #tpu.memory_space<vmem>>, vector<8x256xbf16>
    %c0_1 = arith.constant 0 : index
    %c0_2 = arith.constant 0 : index
    %1 = vector.load %arg2[%c0_1, %c0_2] : memref<256x128xbf16, #tpu.memory_space<vmem>>, vector<256x128xbf16>
    %cst = arith.constant dense<0.000000e+00> : vector<8x128xf32>
    %2 = tpu.matmul %0, %1, %cst {dimension_numbers = #tpu.dot_dimension_numbers<[1], [0], [0], [1], [0, 0, 1, 1], [], []>} : vector<8x256xbf16>, vector<256x128xbf16>, vector<8x128xf32> -> vector<8x128xf32>
    %c0_3 = arith.constant 0 : index
    %c0_4 = arith.constant 0 : index
    %3 = vector.load %arg3[%c0_3, %c0_4] : memref<1x128xf32, #tpu.memory_space<vmem>>, vector<1x128xf32>
    %4 = vector.broadcast %3 : vector<1x128xf32> to vector<8x128xf32>
    %5 = arith.addf %2, %4 : vector<8x128xf32>
    %cst_5 = arith.constant 0.000000e+00 : f32
    %6 = vector.broadcast %cst_5 : f32 to vector<8x128xf32>
    %7 = arith.maximumf %5, %6 : vector<8x128xf32>
    %8 = arith.truncf %7 : vector<8x128xf32> to vector<8x128xbf16>
    %c0_6 = arith.constant 0 : index
    %c0_7 = arith.constant 0 : index
    %9 = vector.load %arg4[%c0_6, %c0_7] : memref<128x128xbf16, #tpu.memory_space<vmem>>, vector<128x128xbf16>
    %cst_8 = arith.constant dense<0.000000e+00> : vector<8x128xf32>
    %10 = tpu.matmul %8, %9, %cst_8 {dimension_numbers = #tpu.dot_dimension_numbers<[1], [0], [0], [1], [0, 0, 1, 1], [], []>} : vector<8x128xbf16>, vector<128x128xbf16>, vector<8x128xf32> -> vector<8x128xf32>
    %c0_9 = arith.constant 0 : index
    %c0_10 = arith.constant 0 : index
    %11 = vector.load %arg5[%c0_9, %c0_10] : memref<1x128xf32, #tpu.memory_space<vmem>>, vector<1x128xf32>
    %12 = vector.broadcast %11 : vector<1x128xf32> to vector<8x128xf32>
    %13 = arith.addf %10, %12 : vector<8x128xf32>
    %cst_11 = arith.constant 0.000000e+00 : f32
    %14 = vector.broadcast %cst_11 : f32 to vector<8x128xf32>
    %15 = arith.maximumf %13, %14 : vector<8x128xf32>
    %16 = arith.truncf %15 : vector<8x128xf32> to vector<8x128xbf16>
    %c0_12 = arith.constant 0 : index
    %c0_13 = arith.constant 0 : index
    %17 = vector.load %arg6[%c0_12, %c0_13] : memref<128x128xbf16, #tpu.memory_space<vmem>>, vector<128x128xbf16>
    %cst_14 = arith.constant dense<0.000000e+00> : vector<8x128xf32>
    %18 = tpu.matmul %16, %17, %cst_14 {dimension_numbers = #tpu.dot_dimension_numbers<[1], [0], [0], [1], [0, 0, 1, 1], [], []>} : vector<8x128xbf16>, vector<128x128xbf16>, vector<8x128xf32> -> vector<8x128xf32>
    %c0_15 = arith.constant 0 : index
    %c0_16 = arith.constant 0 : index
    %19 = vector.load %arg7[%c0_15, %c0_16] : memref<1x128xf32, #tpu.memory_space<vmem>>, vector<1x128xf32>
    %20 = vector.broadcast %19 : vector<1x128xf32> to vector<8x128xf32>
    %21 = arith.addf %18, %20 : vector<8x128xf32>
    %cst_17 = arith.constant 0.000000e+00 : f32
    %22 = vector.broadcast %cst_17 : f32 to vector<8x128xf32>
    %23 = arith.maximumf %21, %22 : vector<8x128xf32>
    %24 = arith.truncf %23 : vector<8x128xf32> to vector<8x128xbf16>
    %c0_18 = arith.constant 0 : index
    %c0_19 = arith.constant 0 : index
    %25 = vector.load %arg8[%c0_18, %c0_19] : memref<128x128xbf16, #tpu.memory_space<vmem>>, vector<128x128xbf16>
    %cst_20 = arith.constant dense<0.000000e+00> : vector<8x128xf32>
    %26 = tpu.matmul %24, %25, %cst_20 {dimension_numbers = #tpu.dot_dimension_numbers<[1], [0], [0], [1], [0, 0, 1, 1], [], []>} : vector<8x128xbf16>, vector<128x128xbf16>, vector<8x128xf32> -> vector<8x128xf32>
    %c0_21 = arith.constant 0 : index
    %c0_22 = arith.constant 0 : index
    %27 = vector.load %arg9[%c0_21, %c0_22] : memref<1x128xf32, #tpu.memory_space<vmem>>, vector<1x128xf32>
    %28 = vector.broadcast %27 : vector<1x128xf32> to vector<8x128xf32>
    %29 = arith.addf %26, %28 : vector<8x128xf32>
    %cst_23 = arith.constant 0.000000e+00 : f32
    %30 = vector.broadcast %cst_23 : f32 to vector<8x128xf32>
    %31 = arith.maximumf %29, %30 : vector<8x128xf32>
    %c0_24 = arith.constant 0 : index
    %c0_25 = arith.constant 0 : index
    %32 = vector.load %arg10[%c0_24, %c0_25] : memref<1x128xbf16, #tpu.memory_space<vmem>>, vector<1x128xbf16>
    %33 = arith.truncf %31 : vector<8x128xf32> to vector<8x128xbf16>
    %cst_26 = arith.constant dense<0.000000e+00> : vector<1x8xf32>
    %34 = tpu.matmul %32, %33, %cst_26 {dimension_numbers = #tpu.dot_dimension_numbers<[1], [1], [0], [0], [0, 0, 1, 0], [], []>} : vector<1x128xbf16>, vector<8x128xbf16>, vector<1x8xf32> -> vector<1x8xf32>
    %c0_27 = arith.constant 0 : index
    %c0_28 = arith.constant 0 : index
    %35 = vector.load %arg11[%c0_27, %c0_28] : memref<1x1xf32, #tpu.memory_space<vmem>>, vector<1x1xf32>
    %36 = vector.broadcast %35 : vector<1x1xf32> to vector<1x8xf32>
    %37 = arith.addf %34, %36 : vector<1x8xf32>
    %cst_29 = arith.constant 0.000000e+00 : f32
    %38 = vector.broadcast %cst_29 : f32 to vector<1x8xf32>
    %39 = arith.subf %38, %37 : vector<1x8xf32>
    %40 = math.exp %39 : vector<1x8xf32>
    %cst_30 = arith.constant 1.000000e+00 : f32
    %41 = vector.broadcast %cst_30 : f32 to vector<1x8xf32>
    %42 = arith.addf %41, %40 : vector<1x8xf32>
    %43 = tpu.reciprocal %42 {approx = true} : vector<1x8xf32> -> vector<1x8xf32>
    %c0_31 = arith.constant 0 : index
    %c0_32 = arith.constant 0 : index
    %44 = vector.load %arg12[%c0_31, %c0_32] : memref<1x8xf32, #tpu.memory_space<vmem>>, vector<1x8xf32>
    tpu.vector_store %arg12[%c0_31, %c0_32], %43 {strides = array<i32>} : memref<1x8xf32, #tpu.memory_space<vmem>>, vector<1x8xf32>,
    return
  }
  func.func @transform_0(%arg0: i32) -> (i32, i32) {
    %c0_i32 = arith.constant 0 : i32
    %c0_i32_0 = arith.constant 0 : i32
    return %arg0, %c0_i32 : i32, i32
  }
  func.func @transform_1(%arg0: i32) -> (i32, i32) {
    %c0_i32 = arith.constant 0 : i32
    %c0_i32_0 = arith.constant 0 : i32
    %c0_i32_1 = arith.constant 0 : i32
    return %c0_i32, %c0_i32_0 : i32, i32
  }
  func.func @transform_2(%arg0: i32) -> (i32, i32) {
    %c0_i32 = arith.constant 0 : i32
    %c0_i32_0 = arith.constant 0 : i32
    %c0_i32_1 = arith.constant 0 : i32
    return %c0_i32, %c0_i32_0 : i32, i32
  }
  func.func @transform_3(%arg0: i32) -> (i32, i32) {
    %c0_i32 = arith.constant 0 : i32
    %c0_i32_0 = arith.constant 0 : i32
    %c0_i32_1 = arith.constant 0 : i32
    return %c0_i32, %c0_i32_0 : i32, i32
  }
  func.func @transform_4(%arg0: i32) -> (i32, i32) {
    %c0_i32 = arith.constant 0 : i32
    %c0_i32_0 = arith.constant 0 : i32
    %c0_i32_1 = arith.constant 0 : i32
    return %c0_i32, %c0_i32_0 : i32, i32
  }
  func.func @transform_5(%arg0: i32) -> (i32, i32) {
    %c0_i32 = arith.constant 0 : i32
    %c0_i32_0 = arith.constant 0 : i32
    %c0_i32_1 = arith.constant 0 : i32
    return %c0_i32, %c0_i32_0 : i32, i32
  }
  func.func @transform_6(%arg0: i32) -> (i32, i32) {
    %c0_i32 = arith.constant 0 : i32
    %c0_i32_0 = arith.constant 0 : i32
    %c0_i32_1 = arith.constant 0 : i32
    return %c0_i32, %c0_i32_0 : i32, i32
  }
  func.func @transform_7(%arg0: i32) -> (i32, i32) {
    %c0_i32 = arith.constant 0 : i32
    %c0_i32_0 = arith.constant 0 : i32
    %c0_i32_1 = arith.constant 0 : i32
    return %c0_i32, %c0_i32_0 : i32, i32
  }
  func.func @transform_8(%arg0: i32) -> (i32, i32) {
    %c0_i32 = arith.constant 0 : i32
    %c0_i32_0 = arith.constant 0 : i32
    %c0_i32_1 = arith.constant 0 : i32
    return %c0_i32, %c0_i32_0 : i32, i32
  }
  func.func @transform_9(%arg0: i32) -> (i32, i32) {
    %c0_i32 = arith.constant 0 : i32
    %c0_i32_0 = arith.constant 0 : i32
    %c0_i32_1 = arith.constant 0 : i32
    return %c0_i32, %c0_i32_0 : i32, i32
  }
  func.func @transform_10(%arg0: i32) -> (i32, i32) {
    %c0_i32 = arith.constant 0 : i32
    %c0_i32_0 = arith.constant 0 : i32
    %c0_i32_1 = arith.constant 0 : i32
    return %c0_i32, %c0_i32_0 : i32, i32
  }
  func.func @transform_11(%arg0: i32) -> (i32, i32) {
    %c0_i32 = arith.constant 0 : i32
    %c0_i32_0 = arith.constant 0 : i32
    return %c0_i32, %arg0 : i32, i32
  }
}

</mosaic_0001>

<llo_original>
// kernel: tpu_custom_call.1
$region0: #{tpu_custom_call.1}
  #allocation0 [shape = 'u32[]', space=smem, size = 0x4, offset = 0x4, fixed_abs, tag = 'smem constant byte address 0x4 - core index']
  #allocation1 [shape = 'u32[144,128]{1,0:T(1,128)}', space=vmem, size = 0x12000, scoped, tag = 'internal scratch']
  #allocation2 [shape = 'f32[1,1]{1,0:T(1,128)S(1)}', space=vmem, size = 0x200, scoped, tag = 'scoped memory for tpu_custom_call.1']
  %s0 = inlined_call_operand.hbm [shape: bf16[8,256], index: 0, kind: input, shape index: {}]
  %s1 = inlined_call_operand.hbm [shape: bf16[256,128], index: 1, kind: input, shape index: {}]
  %s2 = inlined_call_operand.vmem [shape: f32[1,128], index: 2, kind: input, shape index: {}]
  %s3 = inlined_call_operand.hbm [shape: bf16[128,128], index: 3, kind: input, shape index: {}]
  %s4 = inlined_call_operand.vmem [shape: f32[1,128], index: 4, kind: input, shape index: {}]
  %s5 = inlined_call_operand.hbm [shape: bf16[128,128], index: 5, kind: input, shape index: {}]
  %s6 = inlined_call_operand.vmem [shape: f32[1,128], index: 6, kind: input, shape index: {}]
  %s7 = inlined_call_operand.hbm [shape: bf16[128,128], index: 7, kind: input, shape index: {}]
  %s8 = inlined_call_operand.vmem [shape: f32[1,128], index: 8, kind: input, shape index: {}]
  %s9 = inlined_call_operand.vmem [shape: bf16[1,128], index: 9, kind: input, shape index: {}]
  %s10 = inlined_call_operand.<no memory space> [shape: f32[1,1], index: 10, kind: input, shape index: {}]
  %s11 = inlined_call_operand.hbm [shape: f32[1,8], index: 11, kind: output, shape index: {}]
  %s12 = sld [smem:[#allocation0]]
  $region74: #{tpu_custom_call.1} parent=0
    _
  %s14 = ssub.s32 1, %s12
  %s15 = scalar_select 0, %s14, %s12
  %v16 = vstv %s10
  %17 = vst [vmem:[#allocation2] sm:$0x1] %v16
  $region1: #{tpu_custom_call.1} parent=0
    #allocation3 [shape = 'u8[4096]{0}', space=vmem, size = 0x1000, scoped, tag = 'input window, operand 0, single buffered']
    #allocation4 [shape = 's32[1]{0}', space=sflag, size = 0x4, scoped, tag = 'scoped memory for tpu_custom_call.1']
    #allocation5 [shape = 's32[1]{0}', space=sflag, size = 0x4, scoped, tag = 'scoped memory for tpu_custom_call.1']
    #allocation6 [shape = 'u8[65536]{0}', space=vmem, size = 0x10000, scoped, tag = 'input window, operand 1, single buffered']
    #allocation7 [shape = 's32[1]{0}', space=sflag, size = 0x4, scoped, tag = 'scoped memory for tpu_custom_call.1']
    #allocation8 [shape = 'u8[32768]{0}', space=vmem, size = 0x8000, scoped, tag = 'input window, operand 3, single buffered']
    #allocation9 [shape = 'u8[32768]{0}', space=vmem, size = 0x8000, scoped, tag = 'input window, operand 5, single buffered']
    #allocation10 [shape = 's32[1]{0}', space=sflag, size = 0x4, scoped, tag = 'scoped memory for tpu_custom_call.1']
    #allocation11 [shape = 'u8[32768]{0}', space=vmem, size = 0x8000, scoped, tag = 'input window, operand 7, single buffered']
    #allocation12 [shape = 'u8[512]{0}', space=vmem, size = 0x400, scoped, tag = 'output window, operand 0, single buffered']
    %18 = vsyncpa [#allocation4], 0
    %19 = vsyncpa [#allocation7], 0
    %20 = vsyncpa [#allocation10], 0
    %21 = vsyncpa [#allocation5], 0
    // Predicated region
    $region2: #{tpu_custom_call.1} parent=1 // pred_check
      _
    $region3: #{tpu_custom_call.1} parent=1 // pred_check_branch
      %23 = sbr.rel (0) target = $region5
    $region4: #{tpu_custom_call.1} parent=1 // pred_region
      %s25 = ssub.s32 128, 128
      %26 = vsyncadd [#allocation4], %s25
      %s28 = sshll.u32 [#allocation3], 4
      %s29 = int_to_ptr.vmem [resolvable:$true] %s28
      %31 = dma.hbm_to_vmem [thread:$0]  %s0, 128, %s29, [#allocation4]
    $region5: #{tpu_custom_call.1} parent=1 // pred_fallthru
      _
    // Predicated region
    $region6: #{tpu_custom_call.1} parent=1 // pred_check
      _
    $region7: #{tpu_custom_call.1} parent=1 // pred_check_branch
      %33 = sbr.rel (0) target = $region9
    $region8: #{tpu_custom_call.1} parent=1 // pred_region
      %s35 = ssub.s32 2048, 2048
      %36 = vsyncadd [#allocation7], %s35
      %s37 = sshll.u32 [#allocation6], 4
      %s38 = int_to_ptr.vmem [resolvable:$true] %s37
      %43 = dma.hbm_to_vmem [thread:$0]  %s1, 2048, %s38, [#allocation7], 64, 64, 4
    $region9: #{tpu_custom_call.1} parent=1 // pred_fallthru
      _
    // Predicated region
    $region10: #{tpu_custom_call.1} parent=1 // pred_check
      _
    $region11: #{tpu_custom_call.1} parent=1 // pred_check_branch
      %45 = sbr.rel (0) target = $region13
    $region12: #{tpu_custom_call.1} parent=1 // pred_region
      _
    $region13: #{tpu_custom_call.1} parent=1 // pred_fallthru
      _
    // Predicated region
    $region14: #{tpu_custom_call.1} parent=1 // pred_check
      _
    $region15: #{tpu_custom_call.1} parent=1 // pred_check_branch
      %47 = sbr.rel (0) target = $region17
    $region16: #{tpu_custom_call.1} parent=1 // pred_region
      %s49 = ssub.s32 1024, 1024
      %50 = vsyncadd [#allocation7], %s49
      %s51 = sshll.u32 [#allocation8], 4
      %s52 = int_to_ptr.vmem [resolvable:$true] %s51
      %57 = dma.hbm_to_vmem [thread:$0]  %s3, 1024, %s52, [#allocation7], 64, 64, 4
    $region17: #{tpu_custom_call.1} parent=1 // pred_fallthru
      _
    // Predicated region
    $region18: #{tpu_custom_call.1} parent=1 // pred_check
      _
    $region19: #{tpu_custom_call.1} parent=1 // pred_check_branch
      %59 = sbr.rel (0) target = $region21
    $region20: #{tpu_custom_call.1} parent=1 // pred_region
      _
    $region21: #{tpu_custom_call.1} parent=1 // pred_fallthru
      _
    // Predicated region
    $region22: #{tpu_custom_call.1} parent=1 // pred_check
      _
    $region23: #{tpu_custom_call.1} parent=1 // pred_check_branch
      %61 = sbr.rel (0) target = $region25
    $region24: #{tpu_custom_call.1} parent=1 // pred_region
      %s63 = ssub.s32 1024, 1024
      %64 = vsyncadd [#allocation10], %s63
      %s65 = sshll.u32 [#allocation9], 4
      %s66 = int_to_ptr.vmem [resolvable:$true] %s65
      %71 = dma.hbm_to_vmem [thread:$0]  %s5, 1024, %s66, [#allocation10], 64, 64, 4
    $region25: #{tpu_custom_call.1} parent=1 // pred_fallthru
      _
    // Predicated region
    $region26: #{tpu_custom_call.1} parent=1 // pred_check
      _
    $region27: #{tpu_custom_call.1} parent=1 // pred_check_branch
      %73 = sbr.rel (0) target = $region29
    $region28: #{tpu_custom_call.1} parent=1 // pred_region
      _
    $region29: #{tpu_custom_call.1} parent=1 // pred_fallthru
      _
    // Predicated region
    $region30: #{tpu_custom_call.1} parent=1 // pred_check
      _
    $region31: #{tpu_custom_call.1} parent=1 // pred_check_branch
      %75 = sbr.rel (0) target = $region33
    $region32: #{tpu_custom_call.1} parent=1 // pred_region
      %s77 = ssub.s32 1024, 1024
      %78 = vsyncadd [#allocation10], %s77
      %s79 = sshll.u32 [#allocation11], 4
      %s80 = int_to_ptr.vmem [resolvable:$true] %s79
      %85 = dma.hbm_to_vmem [thread:$0]  %s7, 1024, %s80, [#allocation10], 64, 64, 4
    $region33: #{tpu_custom_call.1} parent=1 // pred_fallthru
      _
    // Predicated region
    $region34: #{tpu_custom_call.1} parent=1 // pred_check
      _
    $region35: #{tpu_custom_call.1} parent=1 // pred_check_branch
      %87 = sbr.rel (0) target = $region37
    $region36: #{tpu_custom_call.1} parent=1 // pred_region
      _
    $region37: #{tpu_custom_call.1} parent=1 // pred_fallthru
      _
    // Predicated region
    $region38: #{tpu_custom_call.1} parent=1 // pred_check
      _
    $region39: #{tpu_custom_call.1} parent=1 // pred_check_branch
      %89 = sbr.rel (0) target = $region41
    $region40: #{tpu_custom_call.1} parent=1 // pred_region
      _
    $region41: #{tpu_custom_call.1} parent=1 // pred_fallthru
      _
    // Predicated region
    $region42: #{tpu_custom_call.1} parent=1 // pred_check
      _
    $region43: #{tpu_custom_call.1} parent=1 // pred_check_branch
      %91 = sbr.rel (0) target = $region45
    $region44: #{tpu_custom_call.1} parent=1 // pred_region
      _
    $region45: #{tpu_custom_call.1} parent=1 // pred_fallthru
      _
    // Predicated region
    $region46: #{tpu_custom_call.1} parent=1 // pred_check
      _
    $region47: #{tpu_custom_call.1} parent=1 // pred_check_branch
      %93 = sbr.rel (0) target = $region49
    $region48: #{tpu_custom_call.1} parent=1 // pred_region
      %94 = dma.done [#allocation4], 128
    $region49: #{tpu_custom_call.1} parent=1 // pred_fallthru
      _
    // Predicated region
    $region50: #{tpu_custom_call.1} parent=1 // pred_check
      _
    $region51: #{tpu_custom_call.1} parent=1 // pred_check_branch
      %96 = sbr.rel (0) target = $region53
    $region52: #{tpu_custom_call.1} parent=1 // pred_region
      %97 = dma.done [#allocation7], 2048
    $region53: #{tpu_custom_call.1} parent=1 // pred_fallthru
      _
    // Predicated region
    $region54: #{tpu_custom_call.1} parent=1 // pred_check
      _
    $region55: #{tpu_custom_call.1} parent=1 // pred_check_branch
      %99 = sbr.rel (0) target = $region57
    $region56: #{tpu_custom_call.1} parent=1 // pred_region
      %100 = dma.done [#allocation7], 1024
    $region57: #{tpu_custom_call.1} parent=1 // pred_fallthru
      _
    // Predicated region
    $region58: #{tpu_custom_call.1} parent=1 // pred_check
      _
    $region59: #{tpu_custom_call.1} parent=1 // pred_check_branch
      %102 = sbr.rel (0) target = $region61
    $region60: #{tpu_custom_call.1} parent=1 // pred_region
      %103 = dma.done [#allocation10], 1024
    $region61: #{tpu_custom_call.1} parent=1 // pred_fallthru
      _
    // Predicated region
    $region62: #{tpu_custom_call.1} parent=1 // pred_check
      _
    $region63: #{tpu_custom_call.1} parent=1 // pred_check_branch
      %105 = sbr.rel (0) target = $region65
    $region64: #{tpu_custom_call.1} parent=1 // pred_region
      %106 = dma.done [#allocation10], 1024
    $region65: #{tpu_custom_call.1} parent=1 // pred_fallthru
      _
    %v108 = vld [vmem:[#allocation3] sm:$0xff]
    %v109 = vld [vmem:[#allocation6] sm:$0xf]
    %v110 = vld [vmem:[#allocation6 + $0x4] sm:$0xf]
    %v111 = vld [vmem:[#allocation6 + $0x8] sm:$0xf]
    %v112 = vld [vmem:[#allocation6 + $0xc] sm:$0xf]
    %v113 = vld [vmem:[#allocation6 + $0x10] sm:$0xf]
    %v114 = vld [vmem:[#allocation6 + $0x14] sm:$0xf]
    %v115 = vld [vmem:[#allocation6 + $0x18] sm:$0xf]
    %v116 = vld [vmem:[#allocation6 + $0x1c] sm:$0xf]
    %v117 = vld [vmem:[#allocation6 + $0x20] sm:$0xf]
    %v118 = vld [vmem:[#allocation6 + $0x24] sm:$0xf]
    %v119 = vld [vmem:[#allocation6 + $0x28] sm:$0xf]
    %v120 = vld [vmem:[#allocation6 + $0x2c] sm:$0xf]
    %v121 = vld [vmem:[#allocation6 + $0x30] sm:$0xf]
    %v122 = vld [vmem:[#allocation6 + $0x34] sm:$0xf]
    %v123 = vld [vmem:[#allocation6 + $0x38] sm:$0xf]
    %v124 = vld [vmem:[#allocation6 + $0x3c] sm:$0xf]
    %v125 = vld [vmem:[#allocation6 + $0x40] sm:$0xf]
    %v126 = vld [vmem:[#allocation6 + $0x44] sm:$0xf]
    %v127 = vld [vmem:[#allocation6 + $0x48] sm:$0xf]
    %v128 = vld [vmem:[#allocation6 + $0x4c] sm:$0xf]
    %v129 = vld [vmem:[#allocation6 + $0x50] sm:$0xf]
    %v130 = vld [vmem:[#allocation6 + $0x54] sm:$0xf]
    %v131 = vld [vmem:[#allocation6 + $0x58] sm:$0xf]
    %v132 = vld [vmem:[#allocation6 + $0x5c] sm:$0xf]
    %v133 = vld [vmem:[#allocation6 + $0x60] sm:$0xf]
    %v134 = vld [vmem:[#allocation6 + $0x64] sm:$0xf]
    %v135 = vld [vmem:[#allocation6 + $0x68] sm:$0xf]
    %v136 = vld [vmem:[#allocation6 + $0x6c] sm:$0xf]
    %v137 = vld [vmem:[#allocation6 + $0x70] sm:$0xf]
    %v138 = vld [vmem:[#allocation6 + $0x74] sm:$0xf]
    %v139 = vld [vmem:[#allocation6 + $0x78] sm:$0xf]
    %v140 = vld [vmem:[#allocation6 + $0x7c] sm:$0xf]
    %v141 = vld [vmem:[%s2] sm:$0x1]
    %v143 = vlaneseq
    %v144 = vshrl.u32 %v143, 7
    %v145 = vsub.s32 0, %v144
    %v146 = vrot.slane %v141, %v145
    %v149 = vunpack.c.l.b16 %v108
    %v150 = vunpack.c.h.b16 %v108
    %v151 = vpack.c.b16 %v149, %v149
    %v152 = vpack.c.b16 %v150, %v150
    %v187 = vunpack.c.l.b16 %v109
    %v188 = vunpack.c.l.b16 %v110
    %v189 = vunpack.c.l.b16 %v111
    %v190 = vunpack.c.l.b16 %v112
    %v191 = vunpack.c.l.b16 %v113
    %v192 = vunpack.c.l.b16 %v114
    %v193 = vunpack.c.l.b16 %v115
    %v194 = vunpack.c.l.b16 %v116
    %v195 = vunpack.c.l.b16 %v117
    %v196 = vunpack.c.l.b16 %v118
    %v197 = vunpack.c.l.b16 %v119
    %v198 = vunpack.c.l.b16 %v120
    %v199 = vunpack.c.l.b16 %v121
    %v200 = vunpack.c.l.b16 %v122
    %v201 = vunpack.c.l.b16 %v123
    %v202 = vunpack.c.l.b16 %v124
    %v203 = vunpack.c.l.b16 %v125
    %v204 = vunpack.c.l.b16 %v126
    %v205 = vunpack.c.l.b16 %v127
    %v206 = vunpack.c.l.b16 %v128
    %v207 = vunpack.c.l.b16 %v129
    %v208 = vunpack.c.l.b16 %v130
    %v209 = vunpack.c.l.b16 %v131
    %v210 = vunpack.c.l.b16 %v132
    %v211 = vunpack.c.l.b16 %v133
    %v212 = vunpack.c.l.b16 %v134
    %v213 = vunpack.c.l.b16 %v135
    %v214 = vunpack.c.l.b16 %v136
    %v215 = vunpack.c.l.b16 %v137
    %v216 = vunpack.c.l.b16 %v138
    %v217 = vunpack.c.l.b16 %v139
    %v218 = vunpack.c.l.b16 %v140
    %v219 = vpack.c.b16 %v188, %v187
    %v220 = vpack.c.b16 %v190, %v189
    %v221 = vpack.c.b16 %v192, %v191
    %v222 = vpack.c.b16 %v194, %v193
    %v223 = vpack.c.b16 %v196, %v195
    %v224 = vpack.c.b16 %v198, %v197
    %v225 = vpack.c.b16 %v200, %v199
    %v226 = vpack.c.b16 %v202, %v201
    %v227 = vpack.c.b16 %v204, %v203
    %v228 = vpack.c.b16 %v206, %v205
    %v229 = vpack.c.b16 %v208, %v207
    %v230 = vpack.c.b16 %v210, %v209
    %v231 = vpack.c.b16 %v212, %v211
    %v232 = vpack.c.b16 %v214, %v213
    %v233 = vpack.c.b16 %v216, %v215
    %v234 = vpack.c.b16 %v218, %v217
    %251 = vmatprep.subr.bf16.mxu0 0
    %252 = vmatpush1.bf16.msra.mxu0 %v219
    %253 = vmatprep.subr.bf16.mxu0 0
    %254 = vmatpush1.bf16.msra.mxu0 %v220
    %255 = vmatprep.subr.bf16.mxu0 0
    %256 = vmatpush1.bf16.msra.mxu0 %v221
    %257 = vmatprep.subr.bf16.mxu0 0
    %258 = vmatpush1.bf16.msra.mxu0 %v222
    %259 = vmatprep.subr.bf16.mxu0 0
    %260 = vmatpush1.bf16.msra.mxu0 %v223
    %261 = vmatprep.subr.bf16.mxu0 0
    %262 = vmatpush1.bf16.msra.mxu0 %v224
    %263 = vmatprep.subr.bf16.mxu0 0
    %264 = vmatpush1.bf16.msra.mxu0 %v225
    %265 = vmatprep.subr.bf16.mxu0 0
    %266 = vmatpush1.bf16.msra.mxu0 %v226
    %267 = vmatprep.subr.bf16.mxu0 0
    %268 = vmatpush1.bf16.msra.mxu0 %v227
    %269 = vmatprep.subr.bf16.mxu0 0
    %270 = vmatpush1.bf16.msra.mxu0 %v228
    %271 = vmatprep.subr.bf16.mxu0 0
    %272 = vmatpush1.bf16.msra.mxu0 %v229
    %273 = vmatprep.subr.bf16.mxu0 0
    %274 = vmatpush1.bf16.msra.mxu0 %v230
    %275 = vmatprep.subr.bf16.mxu0 0
    %276 = vmatpush1.bf16.msra.mxu0 %v231
    %277 = vmatprep.subr.bf16.mxu0 0
    %278 = vmatpush1.bf16.msra.mxu0 %v232
    %279 = vmatprep.subr.bf16.mxu0 0
    %280 = vmatpush1.bf16.msra.mxu0 %v233
    %281 = vmatprep.subr.bf16.mxu0 0
    %282 = vmatpush1.bf16.msra.mxu0 %v234
    %283 = vmatprep.mubr.bf16.mxu0 %v152
    %284 = vmatmul.mubr.bf16.gmra.mrb[0].mxu0 %v151
    %v285 = vpop.f32.mrb[0].mxu0
    %v286 = vadd.f32 %v146, %v285
    %v287 = vpop.f32.mrb[0].mxu0
    %v288 = vpop.f32.mrb[0].mxu0
    %v289 = vpop.f32.mrb[0].mxu0
    %290 = vdwg.mxu0
    %v291 = vmax.f32 %v286, 0.0
    %v292 = vpack.c.bf16 %v291, %v291
    %v293 = vld [vmem:[#allocation8] sm:$0xf]
    %v294 = vld [vmem:[#allocation8 + $0x4] sm:$0xf]
    %v295 = vld [vmem:[#allocation8 + $0x8] sm:$0xf]
    %v296 = vld [vmem:[#allocation8 + $0xc] sm:$0xf]
    %v297 = vld [vmem:[#allocation8 + $0x10] sm:$0xf]
    %v298 = vld [vmem:[#allocation8 + $0x14] sm:$0xf]
    %v299 = vld [vmem:[#allocation8 + $0x18] sm:$0xf]
    %v300 = vld [vmem:[#allocation8 + $0x1c] sm:$0xf]
    %v301 = vld [vmem:[#allocation8 + $0x20] sm:$0xf]
    %v302 = vld [vmem:[#allocation8 + $0x24] sm:$0xf]
    %v303 = vld [vmem:[#allocation8 + $0x28] sm:$0xf]
    %v304 = vld [vmem:[#allocation8 + $0x2c] sm:$0xf]
    %v305 = vld [vmem:[#allocation8 + $0x30] sm:$0xf]
    %v306 = vld [vmem:[#allocation8 + $0x34] sm:$0xf]
    %v307 = vld [vmem:[#allocation8 + $0x38] sm:$0xf]
    %v308 = vld [vmem:[#allocation8 + $0x3c] sm:$0xf]
    %v309 = vld [vmem:[%s4] sm:$0x1]
    %v311 = vlaneseq
    %v312 = vshrl.u32 %v311, 7
    %v313 = vsub.s32 0, %v312
    %v314 = vrot.slane %v309, %v313
    %v332 = vunpack.c.l.b16 %v293
    %v333 = vunpack.c.l.b16 %v294
    %v334 = vunpack.c.l.b16 %v295
    %v335 = vunpack.c.l.b16 %v296
    %v336 = vunpack.c.l.b16 %v297
    %v337 = vunpack.c.l.b16 %v298
    %v338 = vunpack.c.l.b16 %v299
    %v339 = vunpack.c.l.b16 %v300
    %v340 = vunpack.c.l.b16 %v301
    %v341 = vunpack.c.l.b16 %v302
    %v342 = vunpack.c.l.b16 %v303
    %v343 = vunpack.c.l.b16 %v304
    %v344 = vunpack.c.l.b16 %v305
    %v345 = vunpack.c.l.b16 %v306
    %v346 = vunpack.c.l.b16 %v307
    %v347 = vunpack.c.l.b16 %v308
    %v348 = vpack.c.b16 %v333, %v332
    %v349 = vpack.c.b16 %v335, %v334
    %v350 = vpack.c.b16 %v337, %v336
    %v351 = vpack.c.b16 %v339, %v338
    %v352 = vpack.c.b16 %v341, %v340
    %v353 = vpack.c.b16 %v343, %v342
    %v354 = vpack.c.b16 %v345, %v344
    %v355 = vpack.c.b16 %v347, %v346
    %364 = vmatprep.subr.bf16.mxu0 0
    %365 = vmatpush1.bf16.msra.mxu0 %v348
    %366 = vmatprep.subr.bf16.mxu0 0
    %367 = vmatpush1.bf16.msra.mxu0 %v349
    %368 = vmatprep.subr.bf16.mxu0 0
    %369 = vmatpush1.bf16.msra.mxu0 %v350
    %370 = vmatprep.subr.bf16.mxu0 0
    %371 = vmatpush1.bf16.msra.mxu0 %v351
    %372 = vmatprep.subr.bf16.mxu0 0
    %373 = vmatpush1.bf16.msra.mxu0 %v352
    %374 = vmatprep.subr.bf16.mxu0 0
    %375 = vmatpush1.bf16.msra.mxu0 %v353
    %376 = vmatprep.subr.bf16.mxu0 0
    %377 = vmatpush1.bf16.msra.mxu0 %v354
    %378 = vmatprep.subr.bf16.mxu0 0
    %379 = vmatpush1.bf16.msra.mxu0 %v355
    %380 = vmatprep.subr.bf16.mxu0 0
    %381 = vmatpush1.bf16.msra.mxu0 0
    %382 = vmatprep.subr.bf16.mxu0 0
    %383 = vmatpush1.bf16.msra.mxu0 0
    %384 = vmatprep.subr.bf16.mxu0 0
    %385 = vmatpush1.bf16.msra.mxu0 0
    %386 = vmatprep.subr.bf16.mxu0 0
    %387 = vmatpush1.bf16.msra.mxu0 0
    %388 = vmatprep.subr.bf16.mxu0 0
    %389 = vmatpush1.bf16.msra.mxu0 0
    %390 = vmatprep.subr.bf16.mxu0 0
    %391 = vmatpush1.bf16.msra.mxu0 0
    %392 = vmatprep.subr.bf16.mxu0 0
    %393 = vmatpush1.bf16.msra.mxu0 0
    %394 = vmatprep.subr.bf16.mxu0 0
    %395 = vmatpush1.bf16.msra.mxu0 0
    %396 = vmatprep.mubr.bf16.mxu0 0
    %397 = vmatmul.mubr.bf16.gmra.mrb[0].mxu0 %v292
    %v398 = vpop.f32.mrb[0].mxu0
    %v399 = vadd.f32 %v314, %v398
    %v400 = vpop.f32.mrb[0].mxu0
    %v401 = vpop.f32.mrb[0].mxu0
    %v402 = vpop.f32.mrb[0].mxu0
    %403 = vdwg.mxu0
    %v404 = vmax.f32 %v399, 0.0
    %v405 = vpack.c.bf16 %v404, %v404
    %v406 = vld [vmem:[#allocation9] sm:$0xf]
    %v407 = vld [vmem:[#allocation9 + $0x4] sm:$0xf]
    %v408 = vld [vmem:[#allocation9 + $0x8] sm:$0xf]
    %v409 = vld [vmem:[#allocation9 + $0xc] sm:$0xf]
    %v410 = vld [vmem:[#allocation9 + $0x10] sm:$0xf]
    %v411 = vld [vmem:[#allocation9 + $0x14] sm:$0xf]
    %v412 = vld [vmem:[#allocation9 + $0x18] sm:$0xf]
    %v413 = vld [vmem:[#allocation9 + $0x1c] sm:$0xf]
    %v414 = vld [vmem:[#allocation9 + $0x20] sm:$0xf]
    %v415 = vld [vmem:[#allocation9 + $0x24] sm:$0xf]
    %v416 = vld [vmem:[#allocation9 + $0x28] sm:$0xf]
    %v417 = vld [vmem:[#allocation9 + $0x2c] sm:$0xf]
    %v418 = vld [vmem:[#allocation9 + $0x30] sm:$0xf]
    %v419 = vld [vmem:[#allocation9 + $0x34] sm:$0xf]
    %v420 = vld [vmem:[#allocation9 + $0x38] sm:$0xf]
    %v421 = vld [vmem:[#allocation9 + $0x3c] sm:$0xf]
    %v422 = vld [vmem:[%s6] sm:$0x1]
    %v424 = vlaneseq
    %v425 = vshrl.u32 %v424, 7
    %v426 = vsub.s32 0, %v425
    %v427 = vrot.slane %v422, %v426
    %v445 = vunpack.c.l.b16 %v406
    %v446 = vunpack.c.l.b16 %v407
    %v447 = vunpack.c.l.b16 %v408
    %v448 = vunpack.c.l.b16 %v409
    %v449 = vunpack.c.l.b16 %v410
    %v450 = vunpack.c.l.b16 %v411
    %v451 = vunpack.c.l.b16 %v412
    %v452 = vunpack.c.l.b16 %v413
    %v453 = vunpack.c.l.b16 %v414
    %v454 = vunpack.c.l.b16 %v415
    %v455 = vunpack.c.l.b16 %v416
    %v456 = vunpack.c.l.b16 %v417
    %v457 = vunpack.c.l.b16 %v418
    %v458 = vunpack.c.l.b16 %v419
    %v459 = vunpack.c.l.b16 %v420
    %v460 = vunpack.c.l.b16 %v421
    %v461 = vpack.c.b16 %v446, %v445
    %v462 = vpack.c.b16 %v448, %v447
    %v463 = vpack.c.b16 %v450, %v449
    %v464 = vpack.c.b16 %v452, %v451
    %v465 = vpack.c.b16 %v454, %v453
    %v466 = vpack.c.b16 %v456, %v455
    %v467 = vpack.c.b16 %v458, %v457
    %v468 = vpack.c.b16 %v460, %v459
    %477 = vmatprep.subr.bf16.mxu0 0
    %478 = vmatpush1.bf16.msra.mxu0 %v461
    %479 = vmatprep.subr.bf16.mxu0 0
    %480 = vmatpush1.bf16.msra.mxu0 %v462
    %481 = vmatprep.subr.bf16.mxu0 0
    %482 = vmatpush1.bf16.msra.mxu0 %v463
    %483 = vmatprep.subr.bf16.mxu0 0
    %484 = vmatpush1.bf16.msra.mxu0 %v464
    %485 = vmatprep.subr.bf16.mxu0 0
    %486 = vmatpush1.bf16.msra.mxu0 %v465
    %487 = vmatprep.subr.bf16.mxu0 0
    %488 = vmatpush1.bf16.msra.mxu0 %v466
    %489 = vmatprep.subr.bf16.mxu0 0
    %490 = vmatpush1.bf16.msra.mxu0 %v467
    %491 = vmatprep.subr.bf16.mxu0 0
    %492 = vmatpush1.bf16.msra.mxu0 %v468
    %493 = vmatprep.subr.bf16.mxu0 0
    %494 = vmatpush1.bf16.msra.mxu0 0
    %495 = vmatprep.subr.bf16.mxu0 0
    %496 = vmatpush1.bf16.msra.mxu0 0
    %497 = vmatprep.subr.bf16.mxu0 0
    %498 = vmatpush1.bf16.msra.mxu0 0
    %499 = vmatprep.subr.bf16.mxu0 0
    %500 = vmatpush1.bf16.msra.mxu0 0
    %501 = vmatprep.subr.bf16.mxu0 0
    %502 = vmatpush1.bf16.msra.mxu0 0
    %503 = vmatprep.subr.bf16.mxu0 0
    %504 = vmatpush1.bf16.msra.mxu0 0
    %505 = vmatprep.subr.bf16.mxu0 0
    %506 = vmatpush1.bf16.msra.mxu0 0
    %507 = vmatprep.subr.bf16.mxu0 0
    %508 = vmatpush1.bf16.msra.mxu0 0
    %509 = vmatprep.mubr.bf16.mxu0 0
    %510 = vmatmul.mubr.bf16.gmra.mrb[0].mxu0 %v405
    %v511 = vpop.f32.mrb[0].mxu0
    %v512 = vadd.f32 %v427, %v511
    %v513 = vpop.f32.mrb[0].mxu0
    %v514 = vpop.f32.mrb[0].mxu0
    %v515 = vpop.f32.mrb[0].mxu0
    %516 = vdwg.mxu0
    %v517 = vmax.f32 %v512, 0.0
    %v518 = vpack.c.bf16 %v517, %v517
    %v519 = vld [vmem:[#allocation11] sm:$0xf]
    %v520 = vld [vmem:[#allocation11 + $0x4] sm:$0xf]
    %v521 = vld [vmem:[#allocation11 + $0x8] sm:$0xf]
    %v522 = vld [vmem:[#allocation11 + $0xc] sm:$0xf]
    %v523 = vld [vmem:[#allocation11 + $0x10] sm:$0xf]
    %v524 = vld [vmem:[#allocation11 + $0x14] sm:$0xf]
    %v525 = vld [vmem:[#allocation11 + $0x18] sm:$0xf]
    %v526 = vld [vmem:[#allocation11 + $0x1c] sm:$0xf]
    %v527 = vld [vmem:[#allocation11 + $0x20] sm:$0xf]
    %v528 = vld [vmem:[#allocation11 + $0x24] sm:$0xf]
    %v529 = vld [vmem:[#allocation11 + $0x28] sm:$0xf]
    %v530 = vld [vmem:[#allocation11 + $0x2c] sm:$0xf]
    %v531 = vld [vmem:[#allocation11 + $0x30] sm:$0xf]
    %v532 = vld [vmem:[#allocation11 + $0x34] sm:$0xf]
    %v533 = vld [vmem:[#allocation11 + $0x38] sm:$0xf]
    %v534 = vld [vmem:[#allocation11 + $0x3c] sm:$0xf]
    %v535 = vld [vmem:[%s8] sm:$0x1]
    %v537 = vlaneseq
    %v538 = vshrl.u32 %v537, 7
    %v539 = vsub.s32 0, %v538
    %v540 = vrot.slane %v535, %v539
    %v558 = vunpack.c.l.b16 %v519
    %v559 = vunpack.c.l.b16 %v520
    %v560 = vunpack.c.l.b16 %v521
    %v561 = vunpack.c.l.b16 %v522
    %v562 = vunpack.c.l.b16 %v523
    %v563 = vunpack.c.l.b16 %v524
    %v564 = vunpack.c.l.b16 %v525
    %v565 = vunpack.c.l.b16 %v526
    %v566 = vunpack.c.l.b16 %v527
    %v567 = vunpack.c.l.b16 %v528
    %v568 = vunpack.c.l.b16 %v529
    %v569 = vunpack.c.l.b16 %v530
    %v570 = vunpack.c.l.b16 %v531
    %v571 = vunpack.c.l.b16 %v532
    %v572 = vunpack.c.l.b16 %v533
    %v573 = vunpack.c.l.b16 %v534
    %v574 = vpack.c.b16 %v559, %v558
    %v575 = vpack.c.b16 %v561, %v560
    %v576 = vpack.c.b16 %v563, %v562
    %v577 = vpack.c.b16 %v565, %v564
    %v578 = vpack.c.b16 %v567, %v566
    %v579 = vpack.c.b16 %v569, %v568
    %v580 = vpack.c.b16 %v571, %v570
    %v581 = vpack.c.b16 %v573, %v572
    %590 = vmatprep.subr.bf16.mxu0 0
    %591 = vmatpush1.bf16.msra.mxu0 %v574
    %592 = vmatprep.subr.bf16.mxu0 0
    %593 = vmatpush1.bf16.msra.mxu0 %v575
    %594 = vmatprep.subr.bf16.mxu0 0
    %595 = vmatpush1.bf16.msra.mxu0 %v576
    %596 = vmatprep.subr.bf16.mxu0 0
    %597 = vmatpush1.bf16.msra.mxu0 %v577
    %598 = vmatprep.subr.bf16.mxu0 0
    %599 = vmatpush1.bf16.msra.mxu0 %v578
    %600 = vmatprep.subr.bf16.mxu0 0
    %601 = vmatpush1.bf16.msra.mxu0 %v579
    %602 = vmatprep.subr.bf16.mxu0 0
    %603 = vmatpush1.bf16.msra.mxu0 %v580
    %604 = vmatprep.subr.bf16.mxu0 0
    %605 = vmatpush1.bf16.msra.mxu0 %v581
    %606 = vmatprep.subr.bf16.mxu0 0
    %607 = vmatpush1.bf16.msra.mxu0 0
    %608 = vmatprep.subr.bf16.mxu0 0
    %609 = vmatpush1.bf16.msra.mxu0 0
    %610 = vmatprep.subr.bf16.mxu0 0
    %611 = vmatpush1.bf16.msra.mxu0 0
    %612 = vmatprep.subr.bf16.mxu0 0
    %613 = vmatpush1.bf16.msra.mxu0 0
    %614 = vmatprep.subr.bf16.mxu0 0
    %615 = vmatpush1.bf16.msra.mxu0 0
    %616 = vmatprep.subr.bf16.mxu0 0
    %617 = vmatpush1.bf16.msra.mxu0 0
    %618 = vmatprep.subr.bf16.mxu0 0
    %619 = vmatpush1.bf16.msra.mxu0 0
    %620 = vmatprep.subr.bf16.mxu0 0
    %621 = vmatpush1.bf16.msra.mxu0 0
    %622 = vmatprep.mubr.bf16.mxu0 0
    %623 = vmatmul.mubr.bf16.gmra.mrb[0].mxu0 %v518
    %v624 = vpop.f32.mrb[0].mxu0
    %v625 = vadd.f32 %v540, %v624
    %v626 = vpop.f32.mrb[0].mxu0
    %v627 = vpop.f32.mrb[0].mxu0
    %v628 = vpop.f32.mrb[0].mxu0
    %629 = vdwg.mxu0
    %v630 = vmax.f32 %v625, 0.0
    %v631 = vld [vmem:[%s9] sm:$0x1]
    %v632 = vpack.c.bf16 %v630, %v630
    %v633 = vld [vmem:[#allocation2] sm:$0x1]
    %635 = vset.pattern.permute.xlu0 0
    %636 = vperm.xlu0 %635, %v633
    %v637 = vpop.permute.xlu0 %636
    %v639 = vlaneseq
    %v640 = vshrl.u32 %v639, 7
    %v641 = vsub.s32 0, %v640
    %v642 = vrot.slane %v637, %v641
    %643 = vmatprep.subr.bf16.mxu0 0
    %644 = vmatpush1.bf16.xpose.msra.mxu0 %v632
    %645 = vmatprep.subr.bf16.mxu0 0
    %646 = vmatpush1.bf16.xpose.msra.mxu0 0
    %647 = vmatprep.subr.bf16.mxu0 0
    %648 = vmatpush1.bf16.xpose.msra.mxu0 0
    %649 = vmatprep.subr.bf16.mxu0 0
    %650 = vmatpush1.bf16.xpose.msra.mxu0 0
    %651 = vmatprep.subr.bf16.mxu0 0
    %652 = vmatpush1.bf16.xpose.msra.mxu0 0
    %653 = vmatprep.subr.bf16.mxu0 0
    %654 = vmatpush1.bf16.xpose.msra.mxu0 0
    %655 = vmatprep.subr.bf16.mxu0 0
    %656 = vmatpush1.bf16.xpose.msra.mxu0 0
    %657 = vmatprep.subr.bf16.mxu0 0
    %658 = vmatpush1.bf16.xpose.msra.mxu0 0
    %659 = vmatprep.subr.bf16.mxu0 0
    %660 = vmatpush1.bf16.xpose.msra.mxu0 0
    %661 = vmatprep.subr.bf16.mxu0 0
    %662 = vmatpush1.bf16.xpose.msra.mxu0 0
    %663 = vmatprep.subr.bf16.mxu0 0
    %664 = vmatpush1.bf16.xpose.msra.mxu0 0
    %665 = vmatprep.subr.bf16.mxu0 0
    %666 = vmatpush1.bf16.xpose.msra.mxu0 0
    %667 = vmatprep.subr.bf16.mxu0 0
    %668 = vmatpush1.bf16.xpose.msra.mxu0 0
    %669 = vmatprep.subr.bf16.mxu0 0
    %670 = vmatpush1.bf16.xpose.msra.mxu0 0
    %671 = vmatprep.subr.bf16.mxu0 0
    %672 = vmatpush1.bf16.xpose.msra.mxu0 0
    %673 = vmatprep.subr.bf16.mxu0 0
    %674 = vmatpush1.bf16.xpose.msra.mxu0 0
    %675 = vmatprep.mubr.bf16.mxu0 0
    %676 = vmatmul.mubr.bf16.gmra.mrb[0].mxu0 %v631
    %v677 = vpop.f32.mrb[0].mxu0
    %v678 = vadd.f32 %v642, %v677
    %v679 = vpop.f32.mrb[0].mxu0
    %v680 = vpop.f32.mrb[0].mxu0
    %v681 = vpop.f32.mrb[0].mxu0
    %682 = vdwg.mxu0
    %v683 = vsub.f32 0.0, %v678
    %v684 = vmul.f32 %v683, 1.442695
    %v685 = vpow.pop %v684
    %v686 = vadd.f32 %v685, 1.0
    %v687 = vrcp.pop %v686
    %vm688 = vcmask 57344
    %689 = vst.msk [vmem:[#allocation12] sm:$0x1] %vm688, %v687
    // Predicated region
    $region66: #{tpu_custom_call.1} parent=1 // pred_check
      _
    $region67: #{tpu_custom_call.1} parent=1 // pred_check_branch
      %691 = sbr.rel (0) target = $region69
    $region68: #{tpu_custom_call.1} parent=1 // pred_region
      %s693 = ssub.s32 16, 16
      %694 = vsyncadd [#allocation5], %s693
      %s696 = sshll.u32 [#allocation12], 4
      %s697 = int_to_ptr.vmem [resolvable:$true] %s696
      %699 = dma.vmem_to_hbm [thread:$0]  %s697, 16, %s11, [#allocation5]
    $region69: #{tpu_custom_call.1} parent=1 // pred_fallthru
      _
    // Predicated region
    $region70: #{tpu_custom_call.1} parent=1 // pred_check
      _
    $region71: #{tpu_custom_call.1} parent=1 // pred_check_branch
      %701 = sbr.rel (0) target = $region73
    $region72: #{tpu_custom_call.1} parent=1 // pred_region
      %702 = dma.done [#allocation5], 16
    $region73: #{tpu_custom_call.1} parent=1 // pred_fallthru
      _
    %703 = vsyncpa [#allocation4], 1
    %704 = vsyncpa [#allocation7], 1
    %705 = vsyncpa [#allocation10], 1
    %706 = vsyncpa [#allocation5], 1

</llo_original>
